<compile_context>
chip_gen: v5e
topology: v5e:2x2
jax: 0.10.0
libtpu: 0.0.40
codegen_flags: <defaults>
</compile_context>

<pallas_src>
import functools

import jax
import jax.numpy as jnp
from jax.experimental import pallas as pl
from jax.experimental.pallas import tpu as pltpu  # noqa: F401  (kept for TPU-specific extensions)

# ---- config (mirrors __C of the PyTorch module) -----------------------------
HIDDEN_SIZE   = 32   # __C.HIDDEN_SIZE
FLAT_MLP_SIZE = 32   # __C.FLAT_MLP_SIZE
FLAT_GLIMPSES = 2    # __C.FLAT_GLIMPSES
FLAT_OUT_SIZE = 64   # __C.FLAT_OUT_SIZE
BATCH         = 2
SEQ           = 8


def flat_vec_kernel(x_ref, nb_ref, w1_ref, b1_ref, w2_ref, b2_ref, wm_ref, bm_ref,
                    o_ref, *, batch, seq, hidden, glimpses):
    """Whole batch in one shot: MLP -> +mask bias -> softmax(S) -> glimpse contraction -> merge."""
    x = x_ref[...]                                    # (B, S, H)

    # --- MLP over all B*S rows in two fused matmuls ---------------------------
    x2 = x.reshape(batch * seq, hidden)               # (B*S, H)
    h = jnp.dot(x2, w1_ref[...], preferred_element_type=jnp.float32) + b1_ref[...]
    h = jnp.maximum(h, 0.0)                           # ReLU (dropout == identity at eval)
    att = jnp.dot(h, w2_ref[...], preferred_element_type=jnp.float32) + b2_ref[...]  # (B*S, G)

    # --- additive mask + softmax over the sequence axis ------------------------
    att = att.reshape(batch, seq, glimpses) + nb_ref[...]    # nb = mask * -1e9, (B, S, 1)
    att = att - jnp.max(att, axis=1, keepdims=True)
    e = jnp.exp(att)
    att = e / jnp.sum(e, axis=1, keepdims=True)       # (B, S, G)

    # --- glimpse-weighted sums as one batched MXU contraction over S ----------
    att_t = jnp.swapaxes(att, 1, 2)                   # (B, G, S)  canonical (b, m, k)
    xatt = jnp.einsum('bgs,bsh->bgh', att_t, x,
                      preferred_element_type=jnp.float32)     # (B, G, H)

    # --- merge linear: the glimpse concat is folded into row-slices of wm -----
    out = bm_ref[...]                                 # (1, OUT) broadcasts to (B, OUT)
    for g in range(glimpses):                         # static, G == 2
        out = out + jnp.dot(xatt[:, g, :],
                            wm_ref[g * hidden:(g + 1) * hidden, :],
                            preferred_element_type=jnp.float32)
    o_ref[...] = out                                  # single lane-dense (B, OUT) store


def flat_vec(x, x_mask, params):
    """x: (B, S, H) f32, x_mask: (B, 1, 1, S) bool. Returns (B, FLAT_OUT_SIZE) f32."""
    B, S, H = x.shape
    G, M, OUT = FLAT_GLIMPSES, FLAT_MLP_SIZE, FLAT_OUT_SIZE
    w1, b1, w2, b2, wm, bm = params

    # masked_fill(mask, -1e9) as an additive bias: identical after softmax
    # (exp(x - 1e9) underflows to exactly 0 either way for finite x).
    neg_bias = x_mask.reshape(B, S, 1).astype(jnp.float32) * jnp.float32(-1.0e9)

    kernel = functools.partial(flat_vec_kernel, batch=B, seq=S, hidden=H, glimpses=G)
    return pl.pallas_call(
        kernel,
        out_shape=jax.ShapeDtypeStruct((B, OUT), jnp.float32),
        # No grid / no BlockSpecs: the whole working set (~25 KB) lives in VMEM
        # for a single invocation; any tiling would only add per-step overhead.
    )(x, neg_bias, w1, b1, w2, b2, wm, bm)


def flat_vec_reference(x, x_mask, params):
    """Pure-JAX reference mirroring the PyTorch forward literally."""
    w1, b1, w2, b2, wm, bm = params
    att = jnp.maximum(x @ w1 + b1, 0.0) @ w2 + b2                       # (B, S, G)
    mask = x_mask.reshape(x.shape[0], x.shape[1], 1)                    # (B, S, 1)
    att = jnp.where(mask, jnp.float32(-1.0e9), att)
    att = jax.nn.softmax(att, axis=1)
    att_list = [jnp.sum(att[:, :, i:i + 1] * x, axis=1) for i in range(FLAT_GLIMPSES)]
    x_atted = jnp.concatenate(att_list, axis=1)                         # (B, G*H)
    return x_atted @ wm + bm[0]                                         # (B, OUT)


def init_params(key):
    k1, k2, k3 = jax.random.split(key, 3)
    w1 = jax.random.normal(k1, (HIDDEN_SIZE, FLAT_MLP_SIZE), jnp.float32) * 0.05
    b1 = jnp.full((1, FLAT_MLP_SIZE), 0.01, jnp.float32)
    w2 = jax.random.normal(k2, (FLAT_MLP_SIZE, FLAT_GLIMPSES), jnp.float32) * 0.05
    b2 = jnp.full((1, FLAT_GLIMPSES), -0.01, jnp.float32)
    wm = jax.random.normal(k3, (HIDDEN_SIZE * FLAT_GLIMPSES, FLAT_OUT_SIZE), jnp.float32) * 0.05
    bm = jnp.full((1, FLAT_OUT_SIZE), 0.02, jnp.float32)
    return (w1, b1, w2, b2, wm, bm)


if __name__ == "__main__":
    key = jax.random.PRNGKey(0)
    kx, kp = jax.random.split(key)

    params = init_params(kp)
    x = jax.random.normal(kx, (BATCH, SEQ, HIDDEN_SIZE), jnp.float32)

    # Mask out the tail of each sequence (True == padded), shape (B, 1, 1, S) like PyTorch.
    lens = jnp.array([6, 4], dtype=jnp.int32)
    pos = jnp.arange(SEQ, dtype=jnp.int32)
    x_mask = (pos[None, :] >= lens[:, None]).reshape(BATCH, 1, 1, SEQ)

    out = flat_vec(x, x_mask, params)
    out = jax.block_until_ready(out)

    ref = flat_vec_reference(x, x_mask, params)
    assert out.shape == (BATCH, FLAT_OUT_SIZE)
    # Tolerance covers MXU bf16-pass f32 matmul precision for the in-kernel
    # glimpse contraction (the reference keeps that reduction on the exact
    # elementwise path); semantic bugs produce errors orders of magnitude larger.
    assert jnp.allclose(out, ref, atol=2e-3, rtol=2e-3), "Pallas output mismatch vs reference"

    print("KERNEL_OK")
</pallas_src>

<mosaic_0001>
module attributes {stable_mosaic.version = 11 : i64} {
  func.func @flat_vec_kernel(%arg0: memref<2x8x32xf32, #tpu.memory_space<vmem>>, %arg1: memref<2x8x1xf32, #tpu.memory_space<vmem>>, %arg2: memref<32x32xf32, #tpu.memory_space<vmem>>, %arg3: memref<1x32xf32, #tpu.memory_space<vmem>>, %arg4: memref<32x2xf32, #tpu.memory_space<vmem>>, %arg5: memref<1x2xf32, #tpu.memory_space<vmem>>, %arg6: memref<64x64xf32, #tpu.memory_space<vmem>>, %arg7: memref<1x64xf32, #tpu.memory_space<vmem>>, %arg8: memref<2x64xf32, #tpu.memory_space<vmem>>) attributes {dimension_semantics = [], scalar_prefetch = 0 : i64, scratch_operands = 0 : i64, tpu.core_type = #tpu.core_type<tc>} {
    %c0 = arith.constant 0 : index
    %c0_0 = arith.constant 0 : index
    %c0_1 = arith.constant 0 : index
    %0 = vector.load %arg0[%c0, %c0_0, %c0_1] : memref<2x8x32xf32, #tpu.memory_space<vmem>>, vector<2x8x32xf32>
    %1 = vector.shape_cast %0 : vector<2x8x32xf32> to vector<16x32xf32>
    %c0_2 = arith.constant 0 : index
    %c0_3 = arith.constant 0 : index
    %2 = vector.load %arg2[%c0_2, %c0_3] : memref<32x32xf32, #tpu.memory_space<vmem>>, vector<32x32xf32>
    %cst = arith.constant dense<0.000000e+00> : vector<16x32xf32>
    %3 = tpu.matmul %1, %2, %cst {dimension_numbers = #tpu.dot_dimension_numbers<[1], [0], [0], [1], [0, 0, 1, 1], [], []>} : vector<16x32xf32>, vector<32x32xf32>, vector<16x32xf32> -> vector<16x32xf32>
    %c0_4 = arith.constant 0 : index
    %c0_5 = arith.constant 0 : index
    %4 = vector.load %arg3[%c0_4, %c0_5] : memref<1x32xf32, #tpu.memory_space<vmem>>, vector<1x32xf32>
    %5 = vector.broadcast %4 : vector<1x32xf32> to vector<16x32xf32>
    %6 = arith.addf %3, %5 : vector<16x32xf32>
    %cst_6 = arith.constant 0.000000e+00 : f32
    %7 = vector.broadcast %cst_6 : f32 to vector<16x32xf32>
    %8 = arith.maximumf %6, %7 : vector<16x32xf32>
    %c0_7 = arith.constant 0 : index
    %c0_8 = arith.constant 0 : index
    %9 = vector.load %arg4[%c0_7, %c0_8] : memref<32x2xf32, #tpu.memory_space<vmem>>, vector<32x2xf32>
    %cst_9 = arith.constant dense<0.000000e+00> : vector<16x2xf32>
    %10 = tpu.matmul %8, %9, %cst_9 {dimension_numbers = #tpu.dot_dimension_numbers<[1], [0], [0], [1], [0, 0, 1, 1], [], []>} : vector<16x32xf32>, vector<32x2xf32>, vector<16x2xf32> -> vector<16x2xf32>
    %c0_10 = arith.constant 0 : index
    %c0_11 = arith.constant 0 : index
    %11 = vector.load %arg5[%c0_10, %c0_11] : memref<1x2xf32, #tpu.memory_space<vmem>>, vector<1x2xf32>
    %12 = vector.broadcast %11 : vector<1x2xf32> to vector<16x2xf32>
    %13 = arith.addf %10, %12 : vector<16x2xf32>
    %14 = vector.shape_cast %13 : vector<16x2xf32> to vector<2x8x2xf32>
    %c0_12 = arith.constant 0 : index
    %c0_13 = arith.constant 0 : index
    %c0_14 = arith.constant 0 : index
    %15 = vector.load %arg1[%c0_12, %c0_13, %c0_14] : memref<2x8x1xf32, #tpu.memory_space<vmem>>, vector<2x8x1xf32>
    %16 = vector.broadcast %15 : vector<2x8x1xf32> to vector<2x8x2xf32>
    %17 = arith.addf %14, %16 : vector<2x8x2xf32>
    %cst_15 = arith.constant dense<0xFF800000> : vector<2x2xf32>
    %18 = vector.multi_reduction <maximumf>, %17, %cst_15 [1] : vector<2x8x2xf32> to vector<2x2xf32>
    %19 = vector.shape_cast %18 : vector<2x2xf32> to vector<2x1x2xf32>
    %20 = vector.broadcast %19 : vector<2x1x2xf32> to vector<2x8x2xf32>
    %21 = arith.subf %17, %20 : vector<2x8x2xf32>
    %22 = math.exp %21 : vector<2x8x2xf32>
    %cst_16 = arith.constant dense<0.000000e+00> : vector<2x2xf32>
    %23 = vector.multi_reduction <add>, %22, %cst_16 [1] : vector<2x8x2xf32> to vector<2x2xf32>
    %24 = vector.shape_cast %23 : vector<2x2xf32> to vector<2x1x2xf32>
    %25 = vector.broadcast %24 : vector<2x1x2xf32> to vector<2x8x2xf32>
    %26 = arith.divf %22, %25 : vector<2x8x2xf32>
    %27 = tpu.transpose %26, [0, 2, 1] : vector<2x8x2xf32> -> vector<2x2x8xf32>
    "tpu.trace_start"() <{level = 10 : i32, message = "bgs,bsh->bgh"}> : () -> ()
    %cst_17 = arith.constant dense<0.000000e+00> : vector<2x2x32xf32>
    %28 = tpu.matmul %27, %0, %cst_17 {dimension_numbers = #tpu.dot_dimension_numbers<[2], [1], [1], [2], [0, 0, 0, 1, 1, 2], [0], [0]>} : vector<2x2x8xf32>, vector<2x8x32xf32>, vector<2x2x32xf32> -> vector<2x2x32xf32>
    "tpu.trace_stop"() : () -> ()
    %c0_18 = arith.constant 0 : index
    %c0_19 = arith.constant 0 : index
    %29 = vector.load %arg7[%c0_18, %c0_19] : memref<1x64xf32, #tpu.memory_space<vmem>>, vector<1x64xf32>
    %30 = vector.extract_strided_slice %28 {offsets = [0, 0, 0], sizes = [2, 1, 32], strides = [1, 1, 1]} : vector<2x2x32xf32> to vector<2x1x32xf32>
    %31 = vector.shape_cast %30 : vector<2x1x32xf32> to vector<2x32xf32>
    %c0_20 = arith.constant 0 : index
    %c0_21 = arith.constant 0 : index
    %32 = vector.load %arg6[%c0_20, %c0_21] : memref<64x64xf32, #tpu.memory_space<vmem>>, vector<32x64xf32>
    %cst_22 = arith.constant dense<0.000000e+00> : vector<2x64xf32>
    %33 = tpu.matmul %31, %32, %cst_22 {dimension_numbers = #tpu.dot_dimension_numbers<[1], [0], [0], [1], [0, 0, 1, 1], [], []>} : vector<2x32xf32>, vector<32x64xf32>, vector<2x64xf32> -> vector<2x64xf32>
    %34 = vector.broadcast %29 : vector<1x64xf32> to vector<2x64xf32>
    %35 = arith.addf %34, %33 : vector<2x64xf32>
    %36 = vector.extract_strided_slice %28 {offsets = [0, 1, 0], sizes = [2, 1, 32], strides = [1, 1, 1]} : vector<2x2x32xf32> to vector<2x1x32xf32>
    %37 = vector.shape_cast %36 : vector<2x1x32xf32> to vector<2x32xf32>
    %c32 = arith.constant 32 : index
    %c0_23 = arith.constant 0 : index
    %38 = vector.load %arg6[%c32, %c0_23] : memref<64x64xf32, #tpu.memory_space<vmem>>, vector<32x64xf32>
    %cst_24 = arith.constant dense<0.000000e+00> : vector<2x64xf32>
    %39 = tpu.matmul %37, %38, %cst_24 {dimension_numbers = #tpu.dot_dimension_numbers<[1], [0], [0], [1], [0, 0, 1, 1], [], []>} : vector<2x32xf32>, vector<32x64xf32>, vector<2x64xf32> -> vector<2x64xf32>
    %40 = arith.addf %35, %39 : vector<2x64xf32>
    %c0_25 = arith.constant 0 : index
    %c0_26 = arith.constant 0 : index
    %41 = vector.load %arg8[%c0_25, %c0_26] : memref<2x64xf32, #tpu.memory_space<vmem>>, vector<2x64xf32>
    tpu.vector_store %arg8[%c0_25, %c0_26], %40 {strides = array<i32>} : memref<2x64xf32, #tpu.memory_space<vmem>>, vector<2x64xf32>,
    return
  }
}

</mosaic_0001>

<llo_original>
// kernel: tpu_custom_call.1
$region0: #{tpu_custom_call.1}
  #allocation0 [shape = 'u32[]', space=smem, size = 0x4, offset = 0x4, fixed_abs, tag = 'smem constant byte address 0x4 - core index']
  #allocation1 [shape = 'u32[72,128]{1,0:T(1,128)}', space=vmem, size = 0x9000, scoped, tag = 'internal scratch']
  %s0 = inlined_call_operand.vmem [shape: f32[2,8,32], index: 0, kind: input, shape index: {}]
  %s1 = inlined_call_operand.vmem [shape: f32[2,8,1], index: 1, kind: input, shape index: {}]
  %s2 = inlined_call_operand.vmem [shape: f32[32,32], index: 2, kind: input, shape index: {}]
  %s3 = inlined_call_operand.vmem [shape: f32[1,32], index: 3, kind: input, shape index: {}]
  %s4 = inlined_call_operand.vmem [shape: f32[32,2], index: 4, kind: input, shape index: {}]
  %s5 = inlined_call_operand.vmem [shape: f32[1,2], index: 5, kind: input, shape index: {}]
  %s6 = inlined_call_operand.hbm [shape: f32[64,64], index: 6, kind: input, shape index: {}]
  %s7 = inlined_call_operand.vmem [shape: f32[1,64], index: 7, kind: input, shape index: {}]
  %s8 = inlined_call_operand.hbm [shape: f32[2,64], index: 8, kind: output, shape index: {}]
  %s9 = sld [smem:[#allocation0]]
  $region46: #{tpu_custom_call.1} parent=0
    _
  %s11 = ssub.s32 1, %s9
  %s12 = scalar_select 0, %s11, %s9
  $region1: #{tpu_custom_call.1} parent=0
    #allocation2 [shape = 'u8[32768]{0}', space=vmem, size = 0x8000, scoped, tag = 'input window, operand 6, single buffered']
    #allocation3 [shape = 's32[1]{0}', space=sflag, size = 0x4, scoped, tag = 'scoped memory for tpu_custom_call.1']
    #allocation4 [shape = 's32[1]{0}', space=sflag, size = 0x4, scoped, tag = 'scoped memory for tpu_custom_call.1']
    #allocation5 [shape = 'u8[1024]{0}', space=vmem, size = 0x400, scoped, tag = 'output window, operand 0, single buffered']
    %13 = vsyncpa [#allocation3], 0
    %14 = vsyncpa [#allocation4], 0
    // Predicated region
    $region2: #{tpu_custom_call.1} parent=1 // pred_check
      _
    $region3: #{tpu_custom_call.1} parent=1 // pred_check_branch
      %16 = sbr.rel (0) target = $region5
    $region4: #{tpu_custom_call.1} parent=1 // pred_region
      _
    $region5: #{tpu_custom_call.1} parent=1 // pred_fallthru
      _
    // Predicated region
    $region6: #{tpu_custom_call.1} parent=1 // pred_check
      _
    $region7: #{tpu_custom_call.1} parent=1 // pred_check_branch
      %18 = sbr.rel (0) target = $region9
    $region8: #{tpu_custom_call.1} parent=1 // pred_region
      _
    $region9: #{tpu_custom_call.1} parent=1 // pred_fallthru
      _
    // Predicated region
    $region10: #{tpu_custom_call.1} parent=1 // pred_check
      _
    $region11: #{tpu_custom_call.1} parent=1 // pred_check_branch
      %20 = sbr.rel (0) target = $region13
    $region12: #{tpu_custom_call.1} parent=1 // pred_region
      _
    $region13: #{tpu_custom_call.1} parent=1 // pred_fallthru
      _
    // Predicated region
    $region14: #{tpu_custom_call.1} parent=1 // pred_check
      _
    $region15: #{tpu_custom_call.1} parent=1 // pred_check_branch
      %22 = sbr.rel (0) target = $region17
    $region16: #{tpu_custom_call.1} parent=1 // pred_region
      _
    $region17: #{tpu_custom_call.1} parent=1 // pred_fallthru
      _
    // Predicated region
    $region18: #{tpu_custom_call.1} parent=1 // pred_check
      _
    $region19: #{tpu_custom_call.1} parent=1 // pred_check_branch
      %24 = sbr.rel (0) target = $region21
    $region20: #{tpu_custom_call.1} parent=1 // pred_region
      _
    $region21: #{tpu_custom_call.1} parent=1 // pred_fallthru
      _
    // Predicated region
    $region22: #{tpu_custom_call.1} parent=1 // pred_check
      _
    $region23: #{tpu_custom_call.1} parent=1 // pred_check_branch
      %26 = sbr.rel (0) target = $region25
    $region24: #{tpu_custom_call.1} parent=1 // pred_region
      _
    $region25: #{tpu_custom_call.1} parent=1 // pred_fallthru
      _
    // Predicated region
    $region26: #{tpu_custom_call.1} parent=1 // pred_check
      _
    $region27: #{tpu_custom_call.1} parent=1 // pred_check_branch
      %28 = sbr.rel (0) target = $region29
    $region28: #{tpu_custom_call.1} parent=1 // pred_region
      %30 = vsyncadd [#allocation3], 0
      %s31 = sshll.u32 %s6, 4
      %s32 = int_to_ptr.hbm [resolvable:$true] %s31
      %s33 = sshll.u32 [#allocation2], 4
      %s34 = int_to_ptr.vmem [resolvable:$true] %s33
      %39 = dma.hbm_to_vmem [thread:$0]  %s32, 1024, %s34, [#allocation3], 128, 128, 8
    $region29: #{tpu_custom_call.1} parent=1 // pred_fallthru
      _
    // Predicated region
    $region30: #{tpu_custom_call.1} parent=1 // pred_check
      _
    $region31: #{tpu_custom_call.1} parent=1 // pred_check_branch
      %41 = sbr.rel (0) target = $region33
    $region32: #{tpu_custom_call.1} parent=1 // pred_region
      _
    $region33: #{tpu_custom_call.1} parent=1 // pred_fallthru
      _
    // Predicated region
    $region34: #{tpu_custom_call.1} parent=1 // pred_check
      _
    $region35: #{tpu_custom_call.1} parent=1 // pred_check_branch
      %43 = sbr.rel (0) target = $region37
    $region36: #{tpu_custom_call.1} parent=1 // pred_region
      %45 = dma.done [#allocation3], 1024
    $region37: #{tpu_custom_call.1} parent=1 // pred_fallthru
      _
    %v46 = vld [vmem:[%s0] sm:$0xff]
    %v47 = vld [vmem:[%s0 + $0x8] sm:$0xff]
    %v48 = vld [vmem:[%s2] sm:$0xff]
    %v49 = vld [vmem:[%s2 + $0x8] sm:$0xff]
    %v50 = vld [vmem:[%s2 + $0x10] sm:$0xff]
    %v51 = vld [vmem:[%s2 + $0x18] sm:$0xff]
    %v52 = vld [vmem:[%s3] sm:$0x1]
    %v54 = vperm.slane %v52, 0
    %vm56 = vcmask 261120
    %v58 = vsel %vm56, %v46, 0
    %v61 = vsel %vm56, %v47, 0
    %63 = vmatpush.msra.mxu0 0.0
    %64 = vmatpush.msra.mxu0 0.0
    %65 = vmatpush.msra.mxu0 0.0
    %66 = vmatpush.msra.mxu0 0.0
    %67 = vmatpush.msra.mxu0 0.0
    %68 = vmatpush.msra.mxu0 0.0
    %69 = vmatpush.msra.mxu0 0.0
    %70 = vmatpush.msra.mxu0 0.0
    %71 = vmatpush.msra.mxu0 0.0
    %72 = vmatpush.msra.mxu0 0.0
    %73 = vmatpush.msra.mxu0 0.0
    %74 = vmatpush.msra.mxu0 0.0
    %75 = vmatpush.msra.mxu0 %v51
    %76 = vmatpush.msra.mxu0 %v50
    %77 = vmatpush.msra.mxu0 %v49
    %78 = vmatpush.msra.mxu0 %v48
    %79 = vmatmul.f32.gmra.mxu0 %v58
    %v80 = vpop.f32.mrf.mxu0
    %v81 = vadd.f32 %v54, %v80
    %82 = vmatmul.f32.gmra.mxu0 %v61
    %v83 = vpop.f32.mrf.mxu0
    %v84 = vadd.f32 %v54, %v83
    %85 = vdwg.mxu0
    %v86 = vmax.f32 %v81, 0.0
    %v87 = vmax.f32 %v84, 0.0
    %v88 = vld [vmem:[%s4] sm:$0xff]
    %v89 = vld [vmem:[%s4 + $0x8] sm:$0xff]
    %v90 = vld [vmem:[%s4 + $0x10] sm:$0xff]
    %v91 = vld [vmem:[%s4 + $0x18] sm:$0xff]
    %v92 = vld [vmem:[%s5] sm:$0x1]
    %v94 = vperm.slane %v92, 0
    %v97 = vsel %vm56, %v86, 0
    %v100 = vsel %vm56, %v87, 0
    %102 = vmatpush.msra.mxu0 0.0
    %103 = vmatpush.msra.mxu0 0.0
    %104 = vmatpush.msra.mxu0 0.0
    %105 = vmatpush.msra.mxu0 0.0
    %106 = vmatpush.msra.mxu0 0.0
    %107 = vmatpush.msra.mxu0 0.0
    %108 = vmatpush.msra.mxu0 0.0
    %109 = vmatpush.msra.mxu0 0.0
    %110 = vmatpush.msra.mxu0 0.0
    %111 = vmatpush.msra.mxu0 0.0
    %112 = vmatpush.msra.mxu0 0.0
    %113 = vmatpush.msra.mxu0 0.0
    %114 = vmatpush.msra.mxu0 %v91
    %115 = vmatpush.msra.mxu0 %v90
    %116 = vmatpush.msra.mxu0 %v89
    %117 = vmatpush.msra.mxu0 %v88
    %118 = vmatmul.f32.gmra.mxu0 %v97
    %v119 = vpop.f32.mrf.mxu0
    %v120 = vadd.f32 %v94, %v119
    %121 = vmatmul.f32.gmra.mxu0 %v100
    %v122 = vpop.f32.mrf.mxu0
    %v123 = vadd.f32 %v94, %v122
    %124 = vdwg.mxu0
    %v125 = vld [vmem:[%s1] sm:$0xff]
    %v126 = vld [vmem:[%s1 + $0x8] sm:$0xff]
    %128 = vset.pattern.permute.xlu0 0
    %129 = vperm.xlu0 %128, %v125
    %v130 = vpop.permute.xlu0 %129
    %133 = vset.pattern.permute.xlu0 0
    %134 = vperm.xlu0 %133, %v126
    %v135 = vpop.permute.xlu0 %134
    %v137 = vadd.f32 %v120, %v130
    %v138 = vadd.f32 %v123, %v135
    %vm139 = vcmask 15360
    %v140 = vsel %vm139, %v137, -inf
    %v141 = vrot.slane %v140, 4
    %v142 = vmax.f32 %v140, %v141
    %v143 = vrot.slane %v142, 2
    %v144 = vmax.f32 %v142, %v143
    %v145 = vrot.slane %v144, 1
    %v146 = vmax.f32 %v144, %v145
    %v147 = vsel %vm139, %v138, -inf
    %v148 = vrot.slane %v147, 4
    %v149 = vmax.f32 %v147, %v148
    %v150 = vrot.slane %v149, 2
    %v151 = vmax.f32 %v149, %v150
    %v152 = vrot.slane %v151, 1
    %v153 = vmax.f32 %v151, %v152
    %v154 = vsub.f32 %v137, %v146
    %v155 = vsub.f32 %v138, %v153
    %v156 = vmul.f32 %v154, 1.442695
    %v157 = vpow.pop %v156
    %v158 = vmul.f32 %v155, 1.442695
    %v159 = vpow.pop %v158
    %v160 = vsel %vm139, %v157, 0.0
    %v161 = vrot.slane %v160, 4
    %v162 = vadd.f32 %v160, %v161
    %v163 = vrot.slane %v162, 2
    %v164 = vadd.f32 %v162, %v163
    %v165 = vrot.slane %v164, 1
    %v166 = vadd.f32 %v164, %v165
    %v167 = vsel %vm139, %v159, 0.0
    %v168 = vrot.slane %v167, 4
    %v169 = vadd.f32 %v167, %v168
    %v170 = vrot.slane %v169, 2
    %v171 = vadd.f32 %v169, %v170
    %v172 = vrot.slane %v171, 1
    %v173 = vadd.f32 %v171, %v172
    %v174 = vrcp.pop %v166
    %v175 = vmul.f32 %v166, %v174
    %v176 = vsub.f32 1.0, %v175
    %v177 = vmul.f32 %v174, %v176
    %v178 = vadd.f32 %v174, %v177
    %vm179 = vweird.f32 %v166
    %vm180 = vweird.f32 %v174
    %vm181 = vmor %vm179, %vm180
    %v182 = vsel %vm181, %v174, %v178
    %v183 = vand.u32 2147483647, %v166
    %vm184 = vcmp.eq.f32.partialorder %v183, 8.507059e+37
    %v185 = vand.u32 %v166, 2147483648
    %v186 = vor.u32 1.1754944e-38, %v185
    %v187 = vsel %vm184, %v186, %v182
    %v188 = vmul.f32 %v157, %v187
    %v189 = vrcp.pop %v173
    %v190 = vmul.f32 %v173, %v189
    %v191 = vsub.f32 1.0, %v190
    %v192 = vmul.f32 %v189, %v191
    %v193 = vadd.f32 %v189, %v192
    %vm194 = vweird.f32 %v173
    %vm195 = vweird.f32 %v189
    %vm196 = vmor %vm194, %vm195
    %v197 = vsel %vm196, %v189, %v193
    %v198 = vand.u32 2147483647, %v173
    %vm199 = vcmp.eq.f32.partialorder %v198, 8.507059e+37
    %v200 = vand.u32 %v173, 2147483648
    %v201 = vor.u32 1.1754944e-38, %v200
    %v202 = vsel %vm199, %v201, %v197
    %v203 = vmul.f32 %v159, %v202
    %204 = vxpose.xlu0.b32.start [1/16] %v188, 128
    %205 = vxpose.xlu0.b32.cont [2/16] 0.0, 128
    %206 = vxpose.xlu0.b32.cont [3/16] 0.0, 128
    %207 = vxpose.xlu0.b32.cont [4/16] 0.0, 128
    %208 = vxpose.xlu0.b32.cont [5/16] 0.0, 128
    %209 = vxpose.xlu0.b32.cont [6/16] 0.0, 128
    %210 = vxpose.xlu0.b32.cont [7/16] 0.0, 128
    %211 = vxpose.xlu0.b32.cont [8/16] 0.0, 128
    %212 = vxpose.xlu0.b32.cont [9/16] 0.0, 128
    %213 = vxpose.xlu0.b32.cont [10/16] 0.0, 128
    %214 = vxpose.xlu0.b32.cont [11/16] 0.0, 128
    %215 = vxpose.xlu0.b32.cont [12/16] 0.0, 128
    %216 = vxpose.xlu0.b32.cont [13/16] 0.0, 128
    %217 = vxpose.xlu0.b32.cont [14/16] 0.0, 128
    %218 = vxpose.xlu0.b32.cont [15/16] 0.0, 128
    %219 = vxpose.xlu0.b32.end [16/16] 0.0, 128
    %v220 = vpop.trf.xlu0
    %v221 = vpop.trf.xlu0
    %v222 = vpop.trf.xlu0
    %v223 = vpop.trf.xlu0
    %v224 = vpop.trf.xlu0
    %v225 = vpop.trf.xlu0
    %v226 = vpop.trf.xlu0
    %v227 = vpop.trf.xlu0
    %v228 = vpop.trf.xlu0
    %v229 = vpop.trf.xlu0
    %v230 = vpop.trf.xlu0
    %v231 = vpop.trf.xlu0
    %v232 = vpop.trf.xlu0
    %v233 = vpop.trf.xlu0
    %v234 = vpop.trf.xlu0
    %v235 = vpop.trf.xlu0
    %236 = vxpose.xlu0.b32.start [1/16] %v203, 128
    %237 = vxpose.xlu0.b32.cont [2/16] 0.0, 128
    %238 = vxpose.xlu0.b32.cont [3/16] 0.0, 128
    %239 = vxpose.xlu0.b32.cont [4/16] 0.0, 128
    %240 = vxpose.xlu0.b32.cont [5/16] 0.0, 128
    %241 = vxpose.xlu0.b32.cont [6/16] 0.0, 128
    %242 = vxpose.xlu0.b32.cont [7/16] 0.0, 128
    %243 = vxpose.xlu0.b32.cont [8/16] 0.0, 128
    %244 = vxpose.xlu0.b32.cont [9/16] 0.0, 128
    %245 = vxpose.xlu0.b32.cont [10/16] 0.0, 128
    %246 = vxpose.xlu0.b32.cont [11/16] 0.0, 128
    %247 = vxpose.xlu0.b32.cont [12/16] 0.0, 128
    %248 = vxpose.xlu0.b32.cont [13/16] 0.0, 128
    %249 = vxpose.xlu0.b32.cont [14/16] 0.0, 128
    %250 = vxpose.xlu0.b32.cont [15/16] 0.0, 128
    %251 = vxpose.xlu0.b32.end [16/16] 0.0, 128
    %v252 = vpop.trf.xlu0
    %v253 = vpop.trf.xlu0
    %v254 = vpop.trf.xlu0
    %v255 = vpop.trf.xlu0
    %v256 = vpop.trf.xlu0
    %v257 = vpop.trf.xlu0
    %v258 = vpop.trf.xlu0
    %v259 = vpop.trf.xlu0
    %v260 = vpop.trf.xlu0
    %v261 = vpop.trf.xlu0
    %v262 = vpop.trf.xlu0
    %v263 = vpop.trf.xlu0
    %v264 = vpop.trf.xlu0
    %v265 = vpop.trf.xlu0
    %v266 = vpop.trf.xlu0
    %v267 = vpop.trf.xlu0
    %vm268 = vcmask 64512
    %v270 = vsel %vm268, %v220, 0
    %272 = vmatpush.msra.mxu0 0.0
    %273 = vmatpush.msra.mxu0 0.0
    %274 = vmatpush.msra.mxu0 0.0
    %275 = vmatpush.msra.mxu0 0.0
    %276 = vmatpush.msra.mxu0 0.0
    %277 = vmatpush.msra.mxu0 0.0
    %278 = vmatpush.msra.mxu0 0.0
    %279 = vmatpush.msra.mxu0 0.0
    %280 = vmatpush.msra.mxu0 0.0
    %281 = vmatpush.msra.mxu0 0.0
    %282 = vmatpush.msra.mxu0 0.0
    %283 = vmatpush.msra.mxu0 0.0
    %284 = vmatpush.msra.mxu0 0.0
    %285 = vmatpush.msra.mxu0 0.0
    %286 = vmatpush.msra.mxu0 0.0
    %287 = vmatpush.msra.mxu0 %v46
    %288 = vmatmul.f32.gmra.mxu0 %v270
    %v289 = vpop.f32.mrf.mxu0
    %v290 = vadd.f32 0.0, %v289
    %291 = vdwg.mxu0
    %v293 = vsel %vm268, %v252, 0
    %295 = vmatpush.msra.mxu0 0.0
    %296 = vmatpush.msra.mxu0 0.0
    %297 = vmatpush.msra.mxu0 0.0
    %298 = vmatpush.msra.mxu0 0.0
    %299 = vmatpush.msra.mxu0 0.0
    %300 = vmatpush.msra.mxu0 0.0
    %301 = vmatpush.msra.mxu0 0.0
    %302 = vmatpush.msra.mxu0 0.0
    %303 = vmatpush.msra.mxu0 0.0
    %304 = vmatpush.msra.mxu0 0.0
    %305 = vmatpush.msra.mxu0 0.0
    %306 = vmatpush.msra.mxu0 0.0
    %307 = vmatpush.msra.mxu0 0.0
    %308 = vmatpush.msra.mxu0 0.0
    %309 = vmatpush.msra.mxu0 0.0
    %310 = vmatpush.msra.mxu0 %v47
    %311 = vmatmul.f32.gmra.mxu0 %v293
    %v312 = vpop.f32.mrf.mxu0
    %v313 = vadd.f32 0.0, %v312
    %314 = vdwg.mxu0
    %v315 = vld [vmem:[%s7] sm:$0x1]
    %v316 = vld [vmem:[#allocation2] sm:$0xff]
    %v317 = vld [vmem:[#allocation2 + $0x8] sm:$0xff]
    %v318 = vld [vmem:[#allocation2 + $0x10] sm:$0xff]
    %v319 = vld [vmem:[#allocation2 + $0x18] sm:$0xff]
    %v322 = vrot.slane %v313, 7
    %vm323 = vcmask 1041409
    %v324 = vsel %vm323, %v322, %v290
    %v325 = vsel %vm56, %v324, 0
    %327 = vmatpush.msra.mxu0 0.0
    %328 = vmatpush.msra.mxu0 0.0
    %329 = vmatpush.msra.mxu0 0.0
    %330 = vmatpush.msra.mxu0 0.0
    %331 = vmatpush.msra.mxu0 0.0
    %332 = vmatpush.msra.mxu0 0.0
    %333 = vmatpush.msra.mxu0 0.0
    %334 = vmatpush.msra.mxu0 0.0
    %335 = vmatpush.msra.mxu0 0.0
    %336 = vmatpush.msra.mxu0 0.0
    %337 = vmatpush.msra.mxu0 0.0
    %338 = vmatpush.msra.mxu0 0.0
    %339 = vmatpush.msra.mxu0 %v319
    %340 = vmatpush.msra.mxu0 %v318
    %341 = vmatpush.msra.mxu0 %v317
    %342 = vmatpush.msra.mxu0 %v316
    %343 = vmatmul.f32.gmra.mxu0 %v325
    %v344 = vpop.f32.mrf.mxu0
    %v345 = vadd.f32 0.0, %v344
    %346 = vdwg.mxu0
    %v348 = vperm.slane %v315, 0
    %v350 = vadd.f32 %v348, %v345
    %v351 = vld [vmem:[#allocation2 + $0x20] sm:$0xff]
    %v352 = vld [vmem:[#allocation2 + $0x28] sm:$0xff]
    %v353 = vld [vmem:[#allocation2 + $0x30] sm:$0xff]
    %v354 = vld [vmem:[#allocation2 + $0x38] sm:$0xff]
    %v355 = vrot.slane %v290, 1
    %v356 = vsel %vm323, %v313, %v355
    %v357 = vsel %vm56, %v356, 0
    %359 = vmatpush.msra.mxu0 0.0
    %360 = vmatpush.msra.mxu0 0.0
    %361 = vmatpush.msra.mxu0 0.0
    %362 = vmatpush.msra.mxu0 0.0
    %363 = vmatpush.msra.mxu0 0.0
    %364 = vmatpush.msra.mxu0 0.0
    %365 = vmatpush.msra.mxu0 0.0
    %366 = vmatpush.msra.mxu0 0.0
    %367 = vmatpush.msra.mxu0 0.0
    %368 = vmatpush.msra.mxu0 0.0
    %369 = vmatpush.msra.mxu0 0.0
    %370 = vmatpush.msra.mxu0 0.0
    %371 = vmatpush.msra.mxu0 %v354
    %372 = vmatpush.msra.mxu0 %v353
    %373 = vmatpush.msra.mxu0 %v352
    %374 = vmatpush.msra.mxu0 %v351
    %375 = vmatmul.f32.gmra.mxu0 %v357
    %v376 = vpop.f32.mrf.mxu0
    %v377 = vadd.f32 0.0, %v376
    %378 = vdwg.mxu0
    %v379 = vadd.f32 %v350, %v377
    %vm380 = vcmask 517120
    %381 = vst.msk [vmem:[#allocation5] sm:$0x3] %vm380, %v379
    // Predicated region
    $region38: #{tpu_custom_call.1} parent=1 // pred_check
      _
    $region39: #{tpu_custom_call.1} parent=1 // pred_check_branch
      %383 = sbr.rel (0) target = $region41
    $region40: #{tpu_custom_call.1} parent=1 // pred_region
      %385 = vsyncadd [#allocation4], 0
      %s387 = sshll.u32 [#allocation5], 4
      %s388 = int_to_ptr.vmem [resolvable:$true] %s387
      %s389 = sshll.u32 %s8, 4
      %s390 = int_to_ptr.hbm [resolvable:$true] %s389
      %392 = dma.vmem_to_hbm [thread:$0]  %s388, 32, %s390, [#allocation4]
    $region41: #{tpu_custom_call.1} parent=1 // pred_fallthru
      _
    // Predicated region
    $region42: #{tpu_custom_call.1} parent=1 // pred_check
      _
    $region43: #{tpu_custom_call.1} parent=1 // pred_check_branch
      %394 = sbr.rel (0) target = $region45
    $region44: #{tpu_custom_call.1} parent=1 // pred_region
      %396 = dma.done [#allocation4], 32
    $region45: #{tpu_custom_call.1} parent=1 // pred_fallthru
      _
    %397 = vsyncpa [#allocation3], 1
    %398 = vsyncpa [#allocation4], 1

</llo_original>
